<compile_context>
chip_gen: v7x
topology: tpu7x:2x2x1
jax: 0.10.0
libtpu: 0.0.40
codegen_flags: <defaults>
</compile_context>

<pallas_src>
import jax
import jax.numpy as jnp
from jax.experimental import pallas as pl
from jax.experimental.pallas import tpu as pltpu


def _crelu_kernel(x_ref, o_ref):
    # x_ref block: (1, tile_c, tile_l)
    # o_ref block: (1, 2, tile_c, tile_l); index 0 = relu(-x), index 1 = relu(x)
    x = x_ref[...]
    zero = jnp.zeros((), dtype=x.dtype)
    o_ref[:, 0, :, :] = jnp.maximum(-x, zero)
    o_ref[:, 1, :, :] = jnp.maximum(x, zero)


def _pick_tile(n, align, cap):
    """Largest t <= cap with t % align == 0 and n % t == 0; full dim otherwise.

    A full-extent block is always legal, so we fall back to `n` when the dim
    is not a multiple of the alignment or already fits inside the cap.
    """
    cap = max(cap, align)
    if n % align != 0 or n <= cap:
        return n
    best = align
    for t in range(align, cap + 1, align):
        if n % t == 0:
            best = t
    return best


def crelu(x):
    """CReLU forward: concat((-x, x), axis=1) then ReLU. x is NCHW."""
    n, c, h, w = x.shape
    hw = h * w
    itemsize = jnp.dtype(x.dtype).itemsize
    # Sub-32-bit dtypes pack along sublanes: required row alignment grows.
    sub_align = {4: 8, 2: 16, 1: 32}.get(itemsize, 8)

    # Lane-dense view: trailing dim = H*W (multiple of 128 for typical maps).
    x_flat = x.reshape(n, c, hw)

    # Tile sizes: last dim a multiple of 128 (or full extent), second-to-last
    # a multiple of the sublane alignment (or full extent). Caps keep
    # (input + 2x output) blocks, double-buffered, well under the 32 MiB
    # default scoped VMEM on v7x while still being large enough (>= ~512
    # lanes-rows) to amortize the ~0.35 us per-grid-step overhead.
    tile_l = _pick_tile(hw, 128, 2048)
    tile_c = _pick_tile(c, sub_align, max(sub_align, (1 << 20) // (tile_l * itemsize)))

    grid = (n, pl.cdiv(c, tile_c), pl.cdiv(hw, tile_l))

    out_flat = pl.pallas_call(
        _crelu_kernel,
        out_shape=jax.ShapeDtypeStruct((n, 2, c, hw), x.dtype),
        grid=grid,
        in_specs=[pl.BlockSpec((1, tile_c, tile_l), lambda i, j, k: (i, j, k))],
        out_specs=pl.BlockSpec((1, 2, tile_c, tile_l), lambda i, j, k: (i, 0, j, k)),
        compiler_params=pltpu.CompilerParams(
            # Fully elementwise: every grid axis is independent (feeds both
            # v7x TensorCores when the channel/spatial grid is > 1).
            dimension_semantics=("parallel", "parallel", "parallel")
        ),
    )(x_flat)

    # (N, 2, C, H*W) -> (N, 2C, H, W): contiguous reshape == cat((-x, x), dim=1).
    return out_flat.reshape(n, 2 * c, h, w)


if __name__ == "__main__":
    key = jax.random.PRNGKey(0)
    # Small NCHW input consistent with a detection-backbone feature map.
    x = jax.random.normal(key, (2, 4, 16, 16), dtype=jnp.float32)

    out = crelu(x)
    out = jax.block_until_ready(out)

    # Reference check in plain JAX (same semantics as the PyTorch module).
    ref = jnp.maximum(jnp.concatenate((-x, x), axis=1), 0.0)
    assert out.shape == (2, 8, 16, 16)
    assert out.dtype == x.dtype
    assert jnp.allclose(out, ref), "mismatch vs. reference CReLU"

    print("KERNEL_OK")
</pallas_src>

<mosaic_0001>
module attributes {stable_mosaic.version = 11 : i64} {
  func.func @_crelu_kernel(%arg0: i32, %arg1: i32, %arg2: i32, %arg3: memref<1x4x256xf32, #tpu.memory_space<vmem>>, %arg4: memref<1x2x4x256xf32, #tpu.memory_space<vmem>>) attributes {dimension_semantics = [#tpu.dimension_semantics<parallel>, #tpu.dimension_semantics<parallel>, #tpu.dimension_semantics<parallel>], iteration_bounds = array<i64: 2, 1, 1>, scalar_prefetch = 0 : i64, scratch_operands = 0 : i64, tpu.core_type = #tpu.core_type<tc>, window_params = [{transform_indices = @transform_0, window_bounds = array<i64: 1, 4, 256>}, {transform_indices = @transform_1, window_bounds = array<i64: 1, 2, 4, 256>}]} {
    %c0 = arith.constant 0 : index
    %c0_0 = arith.constant 0 : index
    %c0_1 = arith.constant 0 : index
    %0 = vector.load %arg3[%c0, %c0_0, %c0_1] : memref<1x4x256xf32, #tpu.memory_space<vmem>>, vector<1x4x256xf32>
    %cst = arith.constant 0.000000e+00 : f32
    %1 = vector.broadcast %cst : f32 to vector<1x4x256xf32>
    %2 = arith.subf %1, %0 : vector<1x4x256xf32>
    %cst_2 = arith.constant 0.000000e+00 : f32
    %3 = vector.broadcast %cst_2 : f32 to vector<1x4x256xf32>
    %4 = arith.maximumf %2, %3 : vector<1x4x256xf32>
    %c0_3 = arith.constant 0 : index
    %c0_4 = arith.constant 0 : index
    %c0_5 = arith.constant 0 : index
    %c0_6 = arith.constant 0 : index
    %5 = vector.load %arg4[%c0_3, %c0_4, %c0_5, %c0_6] : memref<1x2x4x256xf32, #tpu.memory_space<vmem>>, vector<1x1x4x256xf32>
    %6 = vector.shape_cast %5 : vector<1x1x4x256xf32> to vector<1x4x256xf32>
    %7 = vector.shape_cast %4 : vector<1x4x256xf32> to vector<1x1x4x256xf32>
    tpu.vector_store %arg4[%c0_3, %c0_4, %c0_5, %c0_6], %7 {strides = array<i32>} : memref<1x2x4x256xf32, #tpu.memory_space<vmem>>, vector<1x1x4x256xf32>,
    %cst_7 = arith.constant 0.000000e+00 : f32
    %8 = vector.broadcast %cst_7 : f32 to vector<1x4x256xf32>
    %9 = arith.maximumf %0, %8 : vector<1x4x256xf32>
    %c0_8 = arith.constant 0 : index
    %c1 = arith.constant 1 : index
    %c0_9 = arith.constant 0 : index
    %c0_10 = arith.constant 0 : index
    %10 = vector.load %arg4[%c0_8, %c1, %c0_9, %c0_10] : memref<1x2x4x256xf32, #tpu.memory_space<vmem>>, vector<1x1x4x256xf32>
    %11 = vector.shape_cast %10 : vector<1x1x4x256xf32> to vector<1x4x256xf32>
    %12 = vector.shape_cast %9 : vector<1x4x256xf32> to vector<1x1x4x256xf32>
    tpu.vector_store %arg4[%c0_8, %c1, %c0_9, %c0_10], %12 {strides = array<i32>} : memref<1x2x4x256xf32, #tpu.memory_space<vmem>>, vector<1x1x4x256xf32>,
    return
  }
  func.func @transform_0(%arg0: i32, %arg1: i32, %arg2: i32) -> (i32, i32, i32) {
    %c0_i32 = arith.constant 0 : i32
    return %arg0, %arg1, %arg2 : i32, i32, i32
  }
  func.func @transform_1(%arg0: i32, %arg1: i32, %arg2: i32) -> (i32, i32, i32, i32) {
    %c0_i32 = arith.constant 0 : i32
    %c0_i32_0 = arith.constant 0 : i32
    return %arg0, %c0_i32, %arg1, %arg2 : i32, i32, i32, i32
  }
}

</mosaic_0001>

<llo_original>
// kernel: tpu_custom_call.1
$region0: #{tpu_custom_call.1}
  #allocation0 [shape = 'u32[]', space=smem, size = 0x4, offset = 0x4, fixed_abs, tag = 'smem constant byte address 0x4 - core index']
  #allocation1 [shape = 'u32[144,128]{1,0:T(1,128)}', space=vmem, size = 0x12000, scoped, tag = 'internal scratch']
  %s0 = inlined_call_operand.hbm [shape: f32[2,4,256], index: 0, kind: input, shape index: {}]
  %s1 = inlined_call_operand.hbm [shape: f32[2,2,4,256], index: 1, kind: output, shape index: {}]
  %s2 = sld [smem:[#allocation0]]
  $region41: #{tpu_custom_call.1} parent=0
    _
  %s4 = ssub.s32 1, %s2
  %s5 = scalar_select 0, %s4, %s2
  $region1: #{tpu_custom_call.1} parent=0
    #allocation2 [shape = 'u8[8192]{0}', space=vmem, size = 0x2000, scoped, tag = 'input window, operand 0']
    #allocation3 [shape = 's32[2]{0}', space=sflag, size = 0x8, scoped, tag = 'scoped memory for tpu_custom_call.1']
    #allocation4 [shape = 's32[2]{0}', space=sflag, size = 0x8, scoped, tag = 'scoped memory for tpu_custom_call.1']
    #allocation5 [shape = 'u8[16384]{0}', space=vmem, size = 0x4000, scoped, tag = 'output window, operand 0']
    %6 = vsyncpa [#allocation3], 0
    %s7 = scalar_lea.sflag [#allocation3], 1
    %8 = vsyncpa %s7, 0
    %9 = vsyncpa [#allocation4], 0
    %s10 = scalar_lea.sflag [#allocation4], 1
    %11 = vsyncpa %s10, 0
    loop: start=0, step=1, limit=4
    $region2: #{tpu_custom_call.1} parent=1 // loop_pre_header
      _
    $region3: #{tpu_custom_call.1} parent=1 // loop_header
      %s13 = sphi 0, %s17
      %p14 = scmp.ge.s32.totalorder %s13, 4
      %s20 = sphi 0, %s39
      %s21 = sphi 0, %s35
      %s22 = sphi 0, %s31
      %s23 = sphi 0, %s20
      %s24 = sphi 0, %s21
      %s25 = sphi 0, %s22
      %s26 = sphi 0, %s23
      %s27 = sphi 0, %s24
      %s28 = sphi 0, %s25
      %s46 = sphi 0, %s48
      %s49 = sphi 0, %s46
      %s50 = sphi 0, %s49
      %s66 = sphi 0, %s50
      %s76 = sphi 0, %s78
      %s79 = sphi 0, %s76
      %s80 = sphi 0, %s79
      %s96 = sphi 0, %s80
    $region4: #{tpu_custom_call.1} parent=1 // loop_header_branch
      %16 = sbr.rel (%p14) target = $region8
    $region5: #{tpu_custom_call.1} parent=1 // loop_body
      %s18 = ssub.s32 %s13, 1
      %s19 = ssub.s32 %s13, 2
      %s29 = sadd.s32 1, %s22
      %p30 = scmp.ge.s32.totalorder %s29, 1
      %s31 = scalar_select %p30, 0, %s29
      %s32 = sadd.s32 1, %s21
      %s33 = scalar_select %p30, %s32, %s21
      %p34 = scmp.ge.s32.totalorder %s33, 1
      %s35 = scalar_select %p34, 0, %s33
      %s36 = sadd.s32 1, %s20
      %s37 = scalar_select %p34, %s36, %s20
      %p38 = scmp.ge.s32.totalorder %s37, 2
      %s39 = scalar_select %p38, 0, %s37
      %s40 = ssub.s32 %s20, %s39
      %s41 = ssub.s32 %s21, %s35
      %s42 = sor.u32 %s40, %s41
      %s43 = ssub.s32 %s22, %s31
      %s44 = sor.u32 %s42, %s43
      %p45 = scmp.eq.s32.totalorder %s44, 0
      %s47 = sadd.s32 %s46, 1
      %s48 = scalar_select %p45, %s46, %s47
      %p51 = pneg %p45
      %p52 = scmp.eq.s32.totalorder %s13, 1
      %p53 = por %p51, %p52
      %p54 = scmp.ne.s32.totalorder %s46, %s49
      %p55 = scmp.eq.s32.totalorder %s13, 0
      %p56 = por %p54, %p55
      %p57 = scmp.ne.s32.totalorder %s46, %s49
      %p58 = scmp.eq.s32.totalorder %s18, 1
      %p59 = por %p57, %p58
      %p60 = scmp.ne.s32.totalorder %s49, %s50
      %p61 = scmp.eq.s32.totalorder %s18, 0
      %p62 = por %p60, %p61
      %p63 = scmp.ne.s32.totalorder %s49, %s50
      %p64 = scmp.eq.s32.totalorder %s19, 1
      %p65 = por %p63, %p64
      %p67 = scmp.ne.s32.totalorder %s50, %s66
      %p68 = scmp.eq.s32.totalorder %s19, 0
      %p69 = por %p67, %p68
      %s70 = ssub.s32 %s20, %s39
      %s71 = ssub.s32 %s21, %s35
      %s72 = sor.u32 %s70, %s71
      %s73 = ssub.s32 %s22, %s31
      %s74 = sor.u32 %s72, %s73
      %p75 = scmp.eq.s32.totalorder %s74, 0
      %s77 = sadd.s32 %s76, 1
      %s78 = scalar_select %p75, %s76, %s77
      %p81 = pneg %p75
      %p82 = scmp.eq.s32.totalorder %s13, 1
      %p83 = por %p81, %p82
      %p84 = scmp.ne.s32.totalorder %s76, %s79
      %p85 = scmp.eq.s32.totalorder %s13, 0
      %p86 = por %p84, %p85
      %p87 = scmp.ne.s32.totalorder %s76, %s79
      %p88 = scmp.eq.s32.totalorder %s18, 1
      %p89 = por %p87, %p88
      %p90 = scmp.ne.s32.totalorder %s79, %s80
      %p91 = scmp.eq.s32.totalorder %s18, 0
      %p92 = por %p90, %p91
      %p93 = scmp.ne.s32.totalorder %s79, %s80
      %p94 = scmp.eq.s32.totalorder %s19, 1
      %p95 = por %p93, %p94
      %p97 = scmp.ne.s32.totalorder %s80, %s96
      %p98 = scmp.eq.s32.totalorder %s19, 0
      %p99 = por %p97, %p98
      %p100 = scmp.le.s32.totalorder 1, %s13
      %p101 = scmp.lt.s32.totalorder %s13, 3
      %p102 = pnand %p100, %p101
      %p103 = pneg %p102
      // Predicated region
      $region9: #{tpu_custom_call.1} parent=5 // pred_check
        _
      $region10: #{tpu_custom_call.1} parent=5 // pred_check_branch
        %105 = sbr.rel (%p102) target = $region12
      $region11: #{tpu_custom_call.1} parent=5 // pred_region
        %s106 = ssub.s32 %s13, 1
      $region12: #{tpu_custom_call.1} parent=5 // pred_fallthru
        _
      %p107 = scmp.lt.s32.totalorder %s13, 2
      // Predicated region
      $region13: #{tpu_custom_call.1} parent=5 // pred_check
        %p108 = pneg %p107
      $region14: #{tpu_custom_call.1} parent=5 // pred_check_branch
        %110 = sbr.rel (%p108) target = $region16
      $region15: #{tpu_custom_call.1} parent=5 // pred_region
        // Predicated region
        $region17: #{tpu_custom_call.1} parent=15 // pred_check
          %p111 = pneg %p56
        $region18: #{tpu_custom_call.1} parent=15 // pred_check_branch
          %113 = sbr.rel (%p111) target = $region20
        $region19: #{tpu_custom_call.1} parent=15 // pred_region
          %s114 = sand.u32 %s46, 1
          %s115 = scalar_lea.sflag [#allocation3], %s114
          %s116 = sand.u32 %s46, 1
          %s117 = smul.addr %s116, 8
          %s118 = scalar_lea.vmem [#allocation2], %s117
          %s119 = smul.u32 2, %s22
          %s121 = ssub.s32 128, 128
          %122 = vsyncadd %s115, %s121
          %s123 = smul.addr %s21, 2
          %s124 = sadd.s32 %s119, %s123
          %s125 = smul.addr %s20, 2
          %s126 = sadd.s32 %s124, %s125
          %s127 = smul.addr %s126, 64
          %s128 = scalar_lea.hbm %s0, %s127
          %s130 = sshll.u32 %s118, 4
          %s131 = int_to_ptr.vmem [resolvable:$true] %s130
          %133 = dma.hbm_to_vmem [thread:$0]  %s128, 128, %s131, %s115
        $region20: #{tpu_custom_call.1} parent=15 // pred_fallthru
          _
      $region16: #{tpu_custom_call.1} parent=5 // pred_fallthru
        _
      %p134 = scmp.le.s32.totalorder 1, %s13
      %p135 = scmp.lt.s32.totalorder %s13, 3
      %p136 = pnand %p134, %p135
      %p137 = pneg %p136
      // Predicated region
      $region21: #{tpu_custom_call.1} parent=5 // pred_check
        _
      $region22: #{tpu_custom_call.1} parent=5 // pred_check_branch
        %139 = sbr.rel (%p136) target = $region24
      $region23: #{tpu_custom_call.1} parent=5 // pred_region
        %s140 = ssub.s32 %s13, 1
        %s141 = sand.u32 %s49, 1
        %s142 = scalar_lea.sflag [#allocation3], %s141
        %s143 = sand.u32 %s49, 1
        %s144 = smul.addr %s143, 8
        %s145 = scalar_lea.vmem [#allocation2], %s144
        // Predicated region
        $region25: #{tpu_custom_call.1} parent=23 // pred_check
          %p146 = pneg %p62
        $region26: #{tpu_custom_call.1} parent=23 // pred_check_branch
          %148 = sbr.rel (%p146) target = $region28
        $region27: #{tpu_custom_call.1} parent=23 // pred_region
          %149 = dma.done %s142, 128
        $region28: #{tpu_custom_call.1} parent=23 // pred_fallthru
          _
        %s150 = sand.u32 %s49, 1
        %s151 = scalar_lea.sflag [#allocation3], %s150
        %s152 = sand.u32 %s49, 1
        %s153 = smul.addr %s152, 8
        %s154 = scalar_lea.vmem [#allocation2], %s153
        %p155 = pneg %p62
        %p156 = pneg %p59
        %p157 = pneg %p92
        %p158 = pneg %p89
        %s159 = sand.u32 %s79, 1
        %s160 = scalar_lea.sflag [#allocation4], %s159
        %s161 = sand.u32 %s79, 1
        %s162 = smul.addr %s161, 16
        %s163 = scalar_lea.vmem [#allocation5], %s162
        %s164 = smul.u32 2, %s25
        %s165 = smul.u32 2, %s25
        %v166 = vld [vmem:[%s145] sm:$0xff]
        %v167 = vsub.f32 0.0, %v166
        %v168 = vmax.f32 %v167, 0.0
        %169 = vst [vmem:[%s163] sm:$0xff] %v168
        %v170 = vmax.f32 %v166, 0.0
        %s171 = scalar_lea.vmem %s163, 8 [#allocation5]
        %172 = vst [vmem:[%s171] sm:$0xff] %v170
        %s173 = sand.u32 %s79, 1
        %s174 = scalar_lea.sflag [#allocation4], %s173
        %s175 = sand.u32 %s79, 1
        %s176 = smul.addr %s175, 16
        %s177 = scalar_lea.vmem [#allocation5], %s176
        // Predicated region
        $region29: #{tpu_custom_call.1} parent=23 // pred_check
          %p178 = pneg %p89
        $region30: #{tpu_custom_call.1} parent=23 // pred_check_branch
          %180 = sbr.rel (%p178) target = $region32
        $region31: #{tpu_custom_call.1} parent=23 // pred_region
          %s181 = smul.u32 2, %s25
          %s183 = ssub.s32 256, 256
          %184 = vsyncadd %s174, %s183
          %s185 = smul.addr %s24, 2
          %s186 = sadd.s32 %s181, %s185
          %s187 = smul.addr %s23, 4
          %s188 = sadd.s32 %s186, %s187
          %s189 = smul.addr %s188, 64
          %s190 = scalar_lea.hbm %s1, %s189
          %s191 = sshll.u32 %s177, 4
          %s192 = int_to_ptr.vmem [resolvable:$true] %s191
          %197 = dma.vmem_to_hbm [thread:$0]  %s192, 256, %s190, %s174, 128, 128, 8
        $region32: #{tpu_custom_call.1} parent=23 // pred_fallthru
          _
      $region24: #{tpu_custom_call.1} parent=5 // pred_fallthru
        _
      %p198 = scmp.le.s32.totalorder 2, %s13
      // Predicated region
      $region33: #{tpu_custom_call.1} parent=5 // pred_check
        %p199 = pneg %p198
      $region34: #{tpu_custom_call.1} parent=5 // pred_check_branch
        %201 = sbr.rel (%p199) target = $region36
      $region35: #{tpu_custom_call.1} parent=5 // pred_region
        %s202 = ssub.s32 %s13, 2
        // Predicated region
        $region37: #{tpu_custom_call.1} parent=35 // pred_check
          %p203 = pneg %p95
        $region38: #{tpu_custom_call.1} parent=35 // pred_check_branch
          %205 = sbr.rel (%p203) target = $region40
        $region39: #{tpu_custom_call.1} parent=35 // pred_region
          %s206 = sand.u32 %s80, 1
          %s207 = scalar_lea.sflag [#allocation4], %s206
          %s208 = sand.u32 %s80, 1
          %s209 = smul.addr %s208, 16
          %s210 = scalar_lea.vmem [#allocation5], %s209
          %211 = dma.done %s207, 256
        $region40: #{tpu_custom_call.1} parent=35 // pred_fallthru
          _
      $region36: #{tpu_custom_call.1} parent=5 // pred_fallthru
        _
    $region6: #{tpu_custom_call.1} parent=1 // loop_footer
      %s17 = sadd.s32 1, %s13
    $region7: #{tpu_custom_call.1} parent=1 // loop_footer_branch
      %12 = sbr.rel target = $region3
    $region8: #{tpu_custom_call.1} parent=1 // loop_exit
      _
    %212 = vsyncpa [#allocation3], 1
    %s213 = scalar_lea.sflag [#allocation3], 1
    %214 = vsyncpa %s213, 1
    %215 = vsyncpa [#allocation4], 1
    %s216 = scalar_lea.sflag [#allocation4], 1
    %217 = vsyncpa %s216, 1

</llo_original>
